<compile_context>
chip_gen: v6e
topology: v6e:2x2x1
jax: 0.10.0
libtpu: 0.0.40
codegen_flags: <defaults>
</compile_context>

<pallas_src>
import functools

import jax
import jax.numpy as jnp
from jax.experimental import pallas as pl
from jax.experimental.pallas import tpu as pltpu


def _conv1d_deriv_kernel(w_ref, x_ref, o_ref, xpad_ref, *, c_in, c_out, ksize, pad):
    """One grid step = one tile of batch rows, channel-major layout.

    w_ref    : SMEM, flat (c_out*c_in*ksize,) f32 taps (already scaled by 1/resol)
    x_ref    : VMEM, (c_in, b_tile, L)  input tile
    o_ref    : VMEM, (c_out, b_tile, L) output tile
    xpad_ref : VMEM scratch, (c_in, b_tile, L + 2*pad) f32 with zero halo columns
    """
    b_tile = x_ref.shape[1]
    length = x_ref.shape[2]

    # Stage the tile into the halo scratch. Edge columns are re-zeroed every
    # step (cheap: 2*pad lanes) so correctness does not depend on which core
    # executes grid step 0 under megacore "parallel" sharding.
    if pad > 0:
        edge = jnp.zeros((c_in, b_tile, pad), dtype=jnp.float32)
        xpad_ref[:, :, 0:pad] = edge
        xpad_ref[:, :, length + pad:length + 2 * pad] = edge
    xpad_ref[:, :, pad:pad + length] = x_ref[...].astype(jnp.float32)

    for co in range(c_out):
        acc = jnp.zeros((b_tile, length), dtype=jnp.float32)
        for ci in range(c_in):
            for k in range(ksize):
                tap = w_ref[(co * c_in + ci) * ksize + k]
                # shifted window of the zero-padded row (cross-correlation)
                window = xpad_ref[ci, :, k:k + length]          # (b_tile, L)
                acc = acc + tap * window
        o_ref[co] = acc.astype(o_ref.dtype)                      # single lane-dense store


def _pick_batch_tile(n, c_in, c_out, length, target_bytes=2 * 1024 * 1024):
    """Rows per grid step: sublane-dense (multiple of 8), ~target_bytes blocks."""
    if n <= 8:
        # Block dim equals the full array dim -> always legal, no padding games.
        return n
    per_row_bytes = max(c_in, c_out) * length * 4
    rows = max(8, target_bytes // max(per_row_bytes, 1))
    rows = max(8, (rows // 8) * 8)
    rows = min(rows, 512)
    rows = min(rows, ((n + 7) // 8) * 8)
    return int(rows)


def conv1d_derivative(x, der_filter, resol):
    """x: (N, C_in, L) float; der_filter: (C_out, C_in, K) float; returns (N, C_out, L)."""
    n, c_in, length = x.shape
    c_out, c_in_w, ksize = der_filter.shape
    assert c_in_w == c_in
    if ksize % 2 != 1:
        # TODO(synk): even kernel_size (padding=K//2 gives L_out = L + 1) not implemented.
        raise NotImplementedError("conv1d_derivative: only odd kernel_size supported")
    pad = ksize // 2

    # Fold the 1/resol scaling into the (tiny) filter taps — free in the wrapper.
    w_flat = (der_filter.astype(jnp.float32) / resol).reshape(-1)

    # Channel-major layout: (C_in, N, L). For the module default C_in == 1 this
    # transpose is a free reshape; it puts batch rows on the sublane axis.
    x_cm = jnp.transpose(x, (1, 0, 2))

    b_tile = _pick_batch_tile(n, c_in, c_out, length)
    grid = (pl.cdiv(n, b_tile),)

    kernel = functools.partial(
        _conv1d_deriv_kernel, c_in=c_in, c_out=c_out, ksize=ksize, pad=pad
    )

    out_cm = pl.pallas_call(
        kernel,
        out_shape=jax.ShapeDtypeStruct((c_out, n, length), x.dtype),
        grid_spec=pltpu.PrefetchScalarGridSpec(
            num_scalar_prefetch=0,
            grid=grid,
            in_specs=[
                # tiny filter lives in SMEM, read as scalars
                pl.BlockSpec(memory_space=pltpu.MemorySpace.SMEM),
                # (C_in, b_tile, L): full channels + full length, tile the batch axis
                pl.BlockSpec((c_in, b_tile, length), lambda b: (0, b, 0)),
            ],
            out_specs=pl.BlockSpec((c_out, b_tile, length), lambda b: (0, b, 0)),
            scratch_shapes=[
                pltpu.VMEM((c_in, b_tile, length + 2 * pad), jnp.float32),
            ],
        ),
        compiler_params=pltpu.CompilerParams(
            dimension_semantics=("parallel",),
            vmem_limit_bytes=32 * 1024 * 1024,
        ),
    )(w_flat, x_cm)

    # Back to PyTorch's NCL layout; free reshape for C_out == 1.
    return jnp.transpose(out_cm, (1, 0, 2))


def _reference(x, der_filter, resol):
    """Plain-JAX cross-correlation with zero padding, /resol (matches nn.Conv1d)."""
    c_out, c_in, k = der_filter.shape
    pad = k // 2
    x_pad = jnp.pad(x.astype(jnp.float32), ((0, 0), (0, 0), (pad, pad)))
    l_out = x.shape[-1] + 2 * pad - k + 1
    ref = jnp.zeros((x.shape[0], c_out, l_out), jnp.float32)
    for co in range(c_out):
        for ci in range(c_in):
            for kk in range(k):
                ref = ref.at[:, co, :].add(
                    der_filter[co, ci, kk] * x_pad[:, ci, kk:kk + l_out]
                )
    return ref / resol


if __name__ == "__main__":
    key = jax.random.PRNGKey(0)
    k1, k2, k3 = jax.random.split(key, 3)

    # Case 1: module defaults — 1->1 channels, K=3 central-difference filter.
    der_filter = jnp.array([[[-1.0, 0.0, 1.0]]], dtype=jnp.float32)
    resol = 2.0 * 0.05  # e.g. 2*dx
    x = jax.random.normal(k1, (2, 1, 16), dtype=jnp.float32)

    out = jax.block_until_ready(conv1d_derivative(x, der_filter, resol))
    ref = _reference(x, der_filter, resol)
    assert out.shape == (2, 1, 16), out.shape
    assert jnp.allclose(out, ref, atol=1e-5, rtol=1e-5), "case 1 mismatch vs reference"

    # Case 2: multi-channel, K=5, batch not a multiple of 8 (general path).
    der_filter2 = jax.random.normal(k2, (2, 2, 5), dtype=jnp.float32)
    resol2 = 0.1
    x2 = jax.random.normal(k3, (3, 2, 40), dtype=jnp.float32)

    out2 = jax.block_until_ready(conv1d_derivative(x2, der_filter2, resol2))
    ref2 = _reference(x2, der_filter2, resol2)
    assert out2.shape == (3, 2, 40), out2.shape
    assert jnp.allclose(out2, ref2, atol=1e-4, rtol=1e-4), "case 2 mismatch vs reference"

    print("KERNEL_OK")
</pallas_src>

<mosaic_0001>
module attributes {stable_mosaic.version = 11 : i64} {
  func.func @_conv1d_deriv_kernel(%arg0: i32, %arg1: memref<3xf32, #tpu.memory_space<smem>>, %arg2: memref<1x2x16xf32, #tpu.memory_space<vmem>>, %arg3: memref<1x2x16xf32, #tpu.memory_space<vmem>>, %arg4: memref<1x2x18xf32, #tpu.memory_space<vmem>>) attributes {dimension_semantics = [#tpu.dimension_semantics<parallel>], iteration_bounds = array<i64: 1>, scalar_prefetch = 0 : i64, scratch_operands = 1 : i64, tpu.core_type = #tpu.core_type<tc>, window_params = [{transform_indices = @transform_0, window_bounds = array<i64: 3>}, {transform_indices = @transform_1, window_bounds = array<i64: 1, 2, 16>}, {transform_indices = @transform_2, window_bounds = array<i64: 1, 2, 16>}]} {
    %cst = arith.constant 0.000000e+00 : f32
    %0 = vector.broadcast %cst : f32 to vector<1x2x1xf32>
    %c0 = arith.constant 0 : index
    %c0_0 = arith.constant 0 : index
    %c0_1 = arith.constant 0 : index
    %1 = vector.load %arg4[%c0, %c0_0, %c0_1] : memref<1x2x18xf32, #tpu.memory_space<vmem>>, vector<1x2x1xf32>
    tpu.vector_store %arg4[%c0, %c0_0, %c0_1], %0 {strides = array<i32>} : memref<1x2x18xf32, #tpu.memory_space<vmem>>, vector<1x2x1xf32>,
    %c0_2 = arith.constant 0 : index
    %c0_3 = arith.constant 0 : index
    %c17 = arith.constant 17 : index
    %2 = vector.load %arg4[%c0_2, %c0_3, %c17] : memref<1x2x18xf32, #tpu.memory_space<vmem>>, vector<1x2x1xf32>
    tpu.vector_store %arg4[%c0_2, %c0_3, %c17], %0 {strides = array<i32>} : memref<1x2x18xf32, #tpu.memory_space<vmem>>, vector<1x2x1xf32>,
    %c0_4 = arith.constant 0 : index
    %c0_5 = arith.constant 0 : index
    %c0_6 = arith.constant 0 : index
    %3 = vector.load %arg2[%c0_4, %c0_5, %c0_6] : memref<1x2x16xf32, #tpu.memory_space<vmem>>, vector<1x2x16xf32>
    %c0_7 = arith.constant 0 : index
    %c0_8 = arith.constant 0 : index
    %c1 = arith.constant 1 : index
    %4 = vector.load %arg4[%c0_7, %c0_8, %c1] : memref<1x2x18xf32, #tpu.memory_space<vmem>>, vector<1x2x16xf32>
    tpu.vector_store %arg4[%c0_7, %c0_8, %c1], %3 {strides = array<i32>} : memref<1x2x18xf32, #tpu.memory_space<vmem>>, vector<1x2x16xf32>,
    %cst_9 = arith.constant 0.000000e+00 : f32
    %5 = vector.broadcast %cst_9 : f32 to vector<2x16xf32>
    %c0_10 = arith.constant 0 : index
    %6 = memref.load %arg1[%c0_10] : memref<3xf32, #tpu.memory_space<smem>>
    %c0_11 = arith.constant 0 : index
    %c0_12 = arith.constant 0 : index
    %c0_13 = arith.constant 0 : index
    %7 = vector.load %arg4[%c0_11, %c0_12, %c0_13] : memref<1x2x18xf32, #tpu.memory_space<vmem>>, vector<1x2x16xf32>
    %8 = vector.shape_cast %7 : vector<1x2x16xf32> to vector<2x16xf32>
    %9 = vector.broadcast %6 : f32 to vector<2x16xf32>
    %10 = arith.mulf %9, %8 : vector<2x16xf32>
    %11 = arith.addf %5, %10 : vector<2x16xf32>
    %c1_14 = arith.constant 1 : index
    %12 = memref.load %arg1[%c1_14] : memref<3xf32, #tpu.memory_space<smem>>
    %c0_15 = arith.constant 0 : index
    %c0_16 = arith.constant 0 : index
    %c1_17 = arith.constant 1 : index
    %13 = vector.load %arg4[%c0_15, %c0_16, %c1_17] : memref<1x2x18xf32, #tpu.memory_space<vmem>>, vector<1x2x16xf32>
    %14 = vector.shape_cast %13 : vector<1x2x16xf32> to vector<2x16xf32>
    %15 = vector.broadcast %12 : f32 to vector<2x16xf32>
    %16 = arith.mulf %15, %14 : vector<2x16xf32>
    %17 = arith.addf %11, %16 : vector<2x16xf32>
    %c2 = arith.constant 2 : index
    %18 = memref.load %arg1[%c2] : memref<3xf32, #tpu.memory_space<smem>>
    %c0_18 = arith.constant 0 : index
    %c0_19 = arith.constant 0 : index
    %c2_20 = arith.constant 2 : index
    %19 = vector.load %arg4[%c0_18, %c0_19, %c2_20] : memref<1x2x18xf32, #tpu.memory_space<vmem>>, vector<1x2x16xf32>
    %20 = vector.shape_cast %19 : vector<1x2x16xf32> to vector<2x16xf32>
    %21 = vector.broadcast %18 : f32 to vector<2x16xf32>
    %22 = arith.mulf %21, %20 : vector<2x16xf32>
    %23 = arith.addf %17, %22 : vector<2x16xf32>
    %c0_21 = arith.constant 0 : index
    %c0_22 = arith.constant 0 : index
    %c0_23 = arith.constant 0 : index
    %24 = vector.load %arg3[%c0_21, %c0_22, %c0_23] : memref<1x2x16xf32, #tpu.memory_space<vmem>>, vector<1x2x16xf32>
    %25 = vector.shape_cast %24 : vector<1x2x16xf32> to vector<2x16xf32>
    %26 = vector.shape_cast %23 : vector<2x16xf32> to vector<1x2x16xf32>
    tpu.vector_store %arg3[%c0_21, %c0_22, %c0_23], %26 {strides = array<i32>} : memref<1x2x16xf32, #tpu.memory_space<vmem>>, vector<1x2x16xf32>,
    return
  }
  func.func @transform_0(%arg0: i32) -> i32 {
    %c0_i32 = arith.constant 0 : i32
    %c0_i32_0 = arith.constant 0 : i32
    return %c0_i32 : i32
  }
  func.func @transform_1(%arg0: i32) -> (i32, i32, i32) {
    %c0_i32 = arith.constant 0 : i32
    %c0_i32_0 = arith.constant 0 : i32
    %c0_i32_1 = arith.constant 0 : i32
    return %c0_i32, %arg0, %c0_i32_0 : i32, i32, i32
  }
  func.func @transform_2(%arg0: i32) -> (i32, i32, i32) {
    %c0_i32 = arith.constant 0 : i32
    %c0_i32_0 = arith.constant 0 : i32
    %c0_i32_1 = arith.constant 0 : i32
    return %c0_i32, %arg0, %c0_i32_0 : i32, i32, i32
  }
}

</mosaic_0001>

<llo_original>
// kernel: tpu_custom_call.1
$region0: #{tpu_custom_call.1}
  #allocation0 [shape = 'u32[]', space=smem, size = 0x4, offset = 0x4, fixed_abs, tag = 'smem constant byte address 0x4 - core index']
  #allocation1 [shape = 'u32[144,128]{1,0:T(1,128)}', space=vmem, size = 0x12000, scoped, tag = 'internal scratch']
  #allocation2 [shape = 'f32[1,2,18]{2,1,0:T(2,128)}', space=vmem, size = 0x400, scoped, tag = 'scratch operand']
  %s0 = inlined_call_operand.hbm [shape: f32[3], index: 0, kind: input, shape index: {}]
  %s1 = inlined_call_operand.hbm [shape: f32[1,2,16], index: 1, kind: input, shape index: {}]
  %s2 = inlined_call_operand.hbm [shape: f32[1,2,16], index: 2, kind: output, shape index: {}]
  %s3 = sld [smem:[#allocation0]]
  $region26: #{tpu_custom_call.1} parent=0
    _
  %s5 = ssub.s32 1, %s3
  %s6 = scalar_select 0, %s5, %s3
  $region1: #{tpu_custom_call.1} parent=0
    #allocation3 [shape = 'u8[512]{0}', space=smem, size = 0x200, scoped, tag = 'input window, operand 0, single buffered']
    #allocation4 [shape = 's32[1]{0}', space=sflag, size = 0x4, scoped, tag = 'scoped memory for tpu_custom_call.1']
    #allocation5 [shape = 's32[1]{0}', space=sflag, size = 0x4, scoped, tag = 'scoped memory for tpu_custom_call.1']
    #allocation6 [shape = 's32[1]{0}', space=sflag, size = 0x4, scoped, tag = 'scoped memory for tpu_custom_call.1']
    #allocation7 [shape = 'u8[1024]{0}', space=vmem, size = 0x400, scoped, tag = 'input window, operand 1, single buffered']
    #allocation8 [shape = 'u8[1024]{0}', space=vmem, size = 0x400, scoped, tag = 'output window, operand 0, single buffered']
    %7 = vsyncpa [#allocation6], 0
    %8 = vsyncpa [#allocation4], 0
    %9 = vsyncpa [#allocation5], 0
    // Predicated region
    $region2: #{tpu_custom_call.1} parent=1 // pred_check
      _
    $region3: #{tpu_custom_call.1} parent=1 // pred_check_branch
      %11 = sbr.rel (0) target = $region5
    $region4: #{tpu_custom_call.1} parent=1 // pred_region
      %s13 = ssub.s32 16, 16
      %14 = vsyncadd [#allocation6], %s13
      %17 = dma.hbm_to_smem %s0, 16, [#allocation3], [#allocation6]
    $region5: #{tpu_custom_call.1} parent=1 // pred_fallthru
      _
    // Predicated region
    $region6: #{tpu_custom_call.1} parent=1 // pred_check
      _
    $region7: #{tpu_custom_call.1} parent=1 // pred_check_branch
      %19 = sbr.rel (0) target = $region9
    $region8: #{tpu_custom_call.1} parent=1 // pred_region
      %s21 = ssub.s32 32, 32
      %22 = vsyncadd [#allocation4], %s21
      %s24 = sshll.u32 [#allocation7], 4
      %s25 = int_to_ptr.vmem [resolvable:$true] %s24
      %27 = dma.hbm_to_vmem [thread:$0]  %s1, 32, %s25, [#allocation4]
    $region9: #{tpu_custom_call.1} parent=1 // pred_fallthru
      _
    // Predicated region
    $region10: #{tpu_custom_call.1} parent=1 // pred_check
      _
    $region11: #{tpu_custom_call.1} parent=1 // pred_check_branch
      %29 = sbr.rel (0) target = $region13
    $region12: #{tpu_custom_call.1} parent=1 // pred_region
      %30 = dma.done [#allocation6], 16
    $region13: #{tpu_custom_call.1} parent=1 // pred_fallthru
      _
    // Predicated region
    $region14: #{tpu_custom_call.1} parent=1 // pred_check
      _
    $region15: #{tpu_custom_call.1} parent=1 // pred_check_branch
      %32 = sbr.rel (0) target = $region17
    $region16: #{tpu_custom_call.1} parent=1 // pred_region
      %33 = dma.done [#allocation4], 32
    $region17: #{tpu_custom_call.1} parent=1 // pred_fallthru
      _
    %34 = sfence
    %vm35 = vcmask 1024
    %36 = vst.msk [vmem:[#allocation2] sm:$0x3] %vm35, 0.0
    %vm37 = vcmask 140424
    %38 = vst.msk [vmem:[#allocation2] sm:$0x3] %vm37, 0.0
    %v39 = vld [vmem:[#allocation7] sm:$0x3]
    %41 = vrot.lane.b32.xlu0 %v39, 1
    %v42 = vpop.permute.xlu0 %41
    %vm44 = vcmask 132104
    %45 = vst.msk [vmem:[#allocation2] sm:$0x3] %vm44, %v42
    %s46 = sld [smem:[#allocation3]]
    %v47 = vld [vmem:[#allocation2] sm:$0x3]
    %v48 = vstv %s46
    %v49 = vmul.f32 %v48, %v47
    %v50 = vadd.f32 %v49, 0.0
    %s51 = sld [smem:[#allocation3 + $0x1]]
    %v52 = vstv %s51
    %v53 = vmul.f32 %v52, %v47
    %55 = vrot.lane.b32.xlu0 %v53, 127
    %v56 = vpop.permute.xlu0 %55
    %v58 = vadd.f32 %v50, %v56
    %s59 = sld [smem:[#allocation3 + $0x2]]
    %v60 = vstv %s59
    %v61 = vmul.f32 %v60, %v47
    %63 = vrot.lane.b32.xlu0 %v61, 126
    %v64 = vpop.permute.xlu0 %63
    %v66 = vadd.f32 %v58, %v64
    %vm67 = vcmask 123904
    %68 = vst.msk [vmem:[#allocation8] sm:$0x3] %vm67, %v66
    // Predicated region
    $region18: #{tpu_custom_call.1} parent=1 // pred_check
      _
    $region19: #{tpu_custom_call.1} parent=1 // pred_check_branch
      %70 = sbr.rel (0) target = $region21
    $region20: #{tpu_custom_call.1} parent=1 // pred_region
      %s72 = ssub.s32 32, 32
      %73 = vsyncadd [#allocation5], %s72
      %s75 = sshll.u32 [#allocation8], 4
      %s76 = int_to_ptr.vmem [resolvable:$true] %s75
      %78 = dma.vmem_to_hbm [thread:$0]  %s76, 32, %s2, [#allocation5]
    $region21: #{tpu_custom_call.1} parent=1 // pred_fallthru
      _
    // Predicated region
    $region22: #{tpu_custom_call.1} parent=1 // pred_check
      _
    $region23: #{tpu_custom_call.1} parent=1 // pred_check_branch
      %80 = sbr.rel (0) target = $region25
    $region24: #{tpu_custom_call.1} parent=1 // pred_region
      %81 = dma.done [#allocation5], 32
    $region25: #{tpu_custom_call.1} parent=1 // pred_fallthru
      _
    %82 = vsyncpa [#allocation4], 1
    %83 = vsyncpa [#allocation5], 1
    %84 = vsyncpa [#allocation6], 1

</llo_original>
